<compile_context>
chip_gen: v6e
topology: v6e:2x2x1
jax: 0.10.0
libtpu: 0.0.40
codegen_flags: <defaults>
</compile_context>

<pallas_src>
import jax
import jax.numpy as jnp
from jax.experimental import pallas as pl
from jax.experimental.pallas import tpu as pltpu


_LANE = 128
_MAX_LANE_WIDTH = 8192
_TARGET_TILE_BYTES = 4 * 1024 * 1024     # ~4 MiB/block -> 16 MiB with double-buffered in+out
_MIN_PALLAS_ELEMS = 64 * 1024            # below this, XLA's fused tanh is already optimal


def _tanh_kernel(x_ref, o_ref):
    # Elementwise tanh on the current VMEM tile (EUP path, never the bottleneck).
    o_ref[...] = jnp.tanh(x_ref[...])


def _sublane(dtype) -> int:
    # Rows per vreg: 32-bit -> 8, 16-bit -> 16, 8-bit -> 32.
    return max(8, 32 // jnp.dtype(dtype).itemsize)


def _pick_lane_width(total: int, sub: int) -> int:
    """Largest multiple-of-128 lane width (<= 8192) keeping rows a multiple of `sub`."""
    c = _MAX_LANE_WIDTH
    while c > _LANE:
        if total % (sub * c) == 0:
            return c
        c //= 2
    return _LANE


def _pick_row_tile(rows: int, cap: int, sub: int) -> int:
    """Largest divisor of `rows` that is a multiple of `sub` and <= cap."""
    cap = max(sub, min(cap, rows))
    cand = cap - cap % sub
    while cand >= sub:
        if rows % cand == 0:
            return cand
        cand -= sub
    return sub  # unreachable: rows is a multiple of sub by construction


def custom_act_pallas(x: jax.Array, *, min_pallas_elems: int = _MIN_PALLAS_ELEMS) -> jax.Array:
    """Applies tanh elementwise (forward of `custom_act`) via a Pallas TPU kernel."""
    orig_shape = x.shape
    total = x.size

    # Tiny inputs: pallas_call + DMA setup overhead dwarfs the work.
    if total == 0 or total < min_pallas_elems:
        return jnp.tanh(x)

    dtype = x.dtype
    itemsize = jnp.dtype(dtype).itemsize
    sub = _sublane(dtype)

    # Flatten; layout is free for an elementwise op, so present a lane-dense slab
    # to the kernel regardless of the original last-dim width.
    flat = x.reshape(-1)
    pad = (-total) % (sub * _LANE)
    if pad:
        # Tail-only pad (tanh(0) == 0); skipped entirely for aligned inputs.
        flat = jnp.pad(flat, (0, pad))
    total_p = total + pad

    cols = _pick_lane_width(total_p, sub)
    rows = total_p // cols                        # multiple of `sub` by construction

    target_rows = max(sub, _TARGET_TILE_BYTES // (cols * itemsize))
    tile_r = _pick_row_tile(rows, target_rows, sub)
    # Prefer >= 2 grid steps so v7x can shard the parallel axis across its 2 TCs.
    if tile_r == rows and rows > sub:
        tile_r = _pick_row_tile(rows, rows // 2, sub)

    x2 = flat.reshape(rows, cols)
    grid = (rows // tile_r,)

    out = pl.pallas_call(
        _tanh_kernel,
        out_shape=jax.ShapeDtypeStruct((rows, cols), dtype),
        grid=grid,
        in_specs=[pl.BlockSpec((tile_r, cols), lambda i: (i, 0))],
        out_specs=pl.BlockSpec((tile_r, cols), lambda i: (i, 0)),
        compiler_params=pltpu.CompilerParams(
            dimension_semantics=("parallel",),
            vmem_limit_bytes=48 * 1024 * 1024,    # headroom on v5e/v6e, < v7x's 64 MiB physical
        ),
    )(x2)

    if pad:
        return out.reshape(-1)[:total].reshape(orig_shape)
    return out.reshape(orig_shape)


if __name__ == "__main__":
    key = jax.random.PRNGKey(0)
    k1, k2, k3 = jax.random.split(key, 3)

    # Tiny PINN-style batch: takes the jnp.tanh fast path (overhead guard).
    x_small = jax.random.normal(k1, (8, 32), dtype=jnp.float32)
    # Aligned slab: exercises the zero-pad Pallas path (256*512 = 128K elems).
    x_big = jax.random.normal(k2, (256, 512), dtype=jnp.float32)
    # Ragged slab: exercises the tail-padded Pallas path.
    x_ragged = jax.random.normal(k3, (300, 300), dtype=jnp.float32)

    outs = [custom_act_pallas(v) for v in (x_small, x_big, x_ragged)]
    jax.block_until_ready(outs)

    for v, y in zip((x_small, x_big, x_ragged), outs):
        y_ref = jnp.tanh(v)
        assert y.shape == v.shape and y.dtype == v.dtype
        assert jnp.allclose(y, y_ref, atol=1e-5, rtol=1e-5)

    print("KERNEL_OK")
</pallas_src>

<mosaic_0001>
module attributes {stable_mosaic.version = 11 : i64} {
  func.func @_tanh_kernel(%arg0: i32, %arg1: memref<8x8192xf32, #tpu.memory_space<vmem>>, %arg2: memref<8x8192xf32, #tpu.memory_space<vmem>>) attributes {dimension_semantics = [#tpu.dimension_semantics<parallel>], iteration_bounds = array<i64: 2>, scalar_prefetch = 0 : i64, scratch_operands = 0 : i64, tpu.core_type = #tpu.core_type<tc>, window_params = [{transform_indices = @transform_0, window_bounds = array<i64: 8, 8192>}, {transform_indices = @transform_1, window_bounds = array<i64: 8, 8192>}]} {
    %c0 = arith.constant 0 : index
    %c0_0 = arith.constant 0 : index
    %0 = vector.load %arg1[%c0, %c0_0] : memref<8x8192xf32, #tpu.memory_space<vmem>>, vector<8x8192xf32>
    %1 = math.tanh %0 : vector<8x8192xf32>
    %c0_1 = arith.constant 0 : index
    %c0_2 = arith.constant 0 : index
    %2 = vector.load %arg2[%c0_1, %c0_2] : memref<8x8192xf32, #tpu.memory_space<vmem>>, vector<8x8192xf32>
    tpu.vector_store %arg2[%c0_1, %c0_2], %1 {strides = array<i32>} : memref<8x8192xf32, #tpu.memory_space<vmem>>, vector<8x8192xf32>,
    return
  }
  func.func @transform_0(%arg0: i32) -> (i32, i32) {
    %c0_i32 = arith.constant 0 : i32
    %c0_i32_0 = arith.constant 0 : i32
    return %arg0, %c0_i32 : i32, i32
  }
  func.func @transform_1(%arg0: i32) -> (i32, i32) {
    %c0_i32 = arith.constant 0 : i32
    %c0_i32_0 = arith.constant 0 : i32
    return %arg0, %c0_i32 : i32, i32
  }
}

</mosaic_0001>

<llo_original>
// kernel: tpu_custom_call.1
$region0: #{tpu_custom_call.1}
  #allocation0 [shape = 'u32[]', space=smem, size = 0x4, offset = 0x4, fixed_abs, tag = 'smem constant byte address 0x4 - core index']
  #allocation1 [shape = 'u32[144,128]{1,0:T(1,128)}', space=vmem, size = 0x12000, scoped, tag = 'internal scratch']
  %s0 = inlined_call_operand.hbm [shape: f32[16,8192], index: 0, kind: input, shape index: {}]
  %s1 = inlined_call_operand.hbm [shape: f32[16,8192], index: 1, kind: output, shape index: {}]
  %s2 = sld [smem:[#allocation0]]
  $region41: #{tpu_custom_call.1} parent=0
    _
  %s4 = ssub.s32 1, %s2
  %s5 = scalar_select 0, %s4, %s2
  $region1: #{tpu_custom_call.1} parent=0
    #allocation2 [shape = 'u8[524288]{0}', space=vmem, size = 0x80000, scoped, tag = 'input window, operand 0']
    #allocation3 [shape = 's32[2]{0}', space=sflag, size = 0x8, scoped, tag = 'scoped memory for tpu_custom_call.1']
    #allocation4 [shape = 's32[2]{0}', space=sflag, size = 0x8, scoped, tag = 'scoped memory for tpu_custom_call.1']
    #allocation5 [shape = 'u8[524288]{0}', space=vmem, size = 0x80000, scoped, tag = 'output window, operand 0']
    %6 = vsyncpa [#allocation3], 0
    %s7 = scalar_lea.sflag [#allocation3], 1
    %8 = vsyncpa %s7, 0
    %9 = vsyncpa [#allocation4], 0
    %s10 = scalar_lea.sflag [#allocation4], 1
    %11 = vsyncpa %s10, 0
    loop: start=0, step=1, limit=4
    $region2: #{tpu_custom_call.1} parent=1 // loop_pre_header
      _
    $region3: #{tpu_custom_call.1} parent=1 // loop_header
      %s13 = sphi 0, %s17
      %p14 = scmp.ge.s32.totalorder %s13, 4
      %s23 = sphi 0, %s25
      %s26 = sphi 0, %s23
      %s27 = sphi 0, %s26
      %s43 = sphi 0, %s27
      %s49 = sphi 0, %s51
      %s52 = sphi 0, %s49
      %s53 = sphi 0, %s52
      %s69 = sphi 0, %s53
    $region4: #{tpu_custom_call.1} parent=1 // loop_header_branch
      %16 = sbr.rel (%p14) target = $region8
    $region5: #{tpu_custom_call.1} parent=1 // loop_body
      %s18 = ssub.s32 %s13, 1
      %s19 = ssub.s32 %s13, 2
      %s20 = sadd.s32 %s13, 1
      %s21 = ssub.s32 %s13, %s20
      %p22 = scmp.eq.s32.totalorder %s21, 0
      %s24 = sadd.s32 %s23, 1
      %s25 = scalar_select %p22, %s23, %s24
      %p28 = pneg %p22
      %p29 = scmp.eq.s32.totalorder %s13, 1
      %p30 = por %p28, %p29
      %p31 = scmp.ne.s32.totalorder %s23, %s26
      %p32 = scmp.eq.s32.totalorder %s13, 0
      %p33 = por %p31, %p32
      %p34 = scmp.ne.s32.totalorder %s23, %s26
      %p35 = scmp.eq.s32.totalorder %s18, 1
      %p36 = por %p34, %p35
      %p37 = scmp.ne.s32.totalorder %s26, %s27
      %p38 = scmp.eq.s32.totalorder %s18, 0
      %p39 = por %p37, %p38
      %p40 = scmp.ne.s32.totalorder %s26, %s27
      %p41 = scmp.eq.s32.totalorder %s19, 1
      %p42 = por %p40, %p41
      %p44 = scmp.ne.s32.totalorder %s27, %s43
      %p45 = scmp.eq.s32.totalorder %s19, 0
      %p46 = por %p44, %p45
      %s47 = ssub.s32 %s13, %s20
      %p48 = scmp.eq.s32.totalorder %s47, 0
      %s50 = sadd.s32 %s49, 1
      %s51 = scalar_select %p48, %s49, %s50
      %p54 = pneg %p48
      %p55 = scmp.eq.s32.totalorder %s13, 1
      %p56 = por %p54, %p55
      %p57 = scmp.ne.s32.totalorder %s49, %s52
      %p58 = scmp.eq.s32.totalorder %s13, 0
      %p59 = por %p57, %p58
      %p60 = scmp.ne.s32.totalorder %s49, %s52
      %p61 = scmp.eq.s32.totalorder %s18, 1
      %p62 = por %p60, %p61
      %p63 = scmp.ne.s32.totalorder %s52, %s53
      %p64 = scmp.eq.s32.totalorder %s18, 0
      %p65 = por %p63, %p64
      %p66 = scmp.ne.s32.totalorder %s52, %s53
      %p67 = scmp.eq.s32.totalorder %s19, 1
      %p68 = por %p66, %p67
      %p70 = scmp.ne.s32.totalorder %s53, %s69
      %p71 = scmp.eq.s32.totalorder %s19, 0
      %p72 = por %p70, %p71
      %p73 = scmp.le.s32.totalorder 1, %s13
      %p74 = scmp.lt.s32.totalorder %s13, 3
      %p75 = pnand %p73, %p74
      %p76 = pneg %p75
      // Predicated region
      $region9: #{tpu_custom_call.1} parent=5 // pred_check
        _
      $region10: #{tpu_custom_call.1} parent=5 // pred_check_branch
        %78 = sbr.rel (%p75) target = $region12
      $region11: #{tpu_custom_call.1} parent=5 // pred_region
        %s79 = ssub.s32 %s13, 1
      $region12: #{tpu_custom_call.1} parent=5 // pred_fallthru
        _
      %p80 = scmp.lt.s32.totalorder %s13, 2
      // Predicated region
      $region13: #{tpu_custom_call.1} parent=5 // pred_check
        %p81 = pneg %p80
      $region14: #{tpu_custom_call.1} parent=5 // pred_check_branch
        %83 = sbr.rel (%p81) target = $region16
      $region15: #{tpu_custom_call.1} parent=5 // pred_region
        // Predicated region
        $region17: #{tpu_custom_call.1} parent=15 // pred_check
          %p84 = pneg %p33
        $region18: #{tpu_custom_call.1} parent=15 // pred_check_branch
          %86 = sbr.rel (%p84) target = $region20
        $region19: #{tpu_custom_call.1} parent=15 // pred_region
          %s87 = sand.u32 %s23, 1
          %s88 = scalar_lea.sflag [#allocation3], %s87
          %s89 = sand.u32 %s23, 1
          %s90 = smul.addr %s89, 512
          %s91 = scalar_lea.vmem [#allocation2], %s90
          %s93 = ssub.s32 8192, 8192
          %94 = vsyncadd %s88, %s93
          %s95 = smul.addr %s13, 64
          %s96 = smul.addr %s95, 128
          %s97 = scalar_lea.hbm %s0, %s96
          %s99 = sshll.u32 %s91, 4
          %s100 = int_to_ptr.vmem [resolvable:$true] %s99
          %102 = dma.hbm_to_vmem [thread:$0]  %s97, 8192, %s100, %s88
        $region20: #{tpu_custom_call.1} parent=15 // pred_fallthru
          _
      $region16: #{tpu_custom_call.1} parent=5 // pred_fallthru
        _
      %p103 = scmp.le.s32.totalorder 1, %s13
      %p104 = scmp.lt.s32.totalorder %s13, 3
      %p105 = pnand %p103, %p104
      %p106 = pneg %p105
      // Predicated region
      $region21: #{tpu_custom_call.1} parent=5 // pred_check
        _
      $region22: #{tpu_custom_call.1} parent=5 // pred_check_branch
        %108 = sbr.rel (%p105) target = $region24
      $region23: #{tpu_custom_call.1} parent=5 // pred_region
        %s109 = ssub.s32 %s13, 1
        %s110 = sand.u32 %s26, 1
        %s111 = scalar_lea.sflag [#allocation3], %s110
        %s112 = sand.u32 %s26, 1
        %s113 = smul.addr %s112, 512
        %s114 = scalar_lea.vmem [#allocation2], %s113
        // Predicated region
        $region25: #{tpu_custom_call.1} parent=23 // pred_check
          %p115 = pneg %p39
        $region26: #{tpu_custom_call.1} parent=23 // pred_check_branch
          %117 = sbr.rel (%p115) target = $region28
        $region27: #{tpu_custom_call.1} parent=23 // pred_region
          %118 = dma.done %s111, 8192
        $region28: #{tpu_custom_call.1} parent=23 // pred_fallthru
          _
        %s119 = sand.u32 %s26, 1
        %s120 = scalar_lea.sflag [#allocation3], %s119
        %s121 = sand.u32 %s26, 1
        %s122 = smul.addr %s121, 512
        %s123 = scalar_lea.vmem [#allocation2], %s122
        %p124 = pneg %p39
        %p125 = pneg %p36
        %p126 = pneg %p65
        %p127 = pneg %p62
        %s128 = sand.u32 %s52, 1
        %s129 = scalar_lea.sflag [#allocation4], %s128
        %s130 = sand.u32 %s52, 1
        %s131 = smul.addr %s130, 512
        %s132 = scalar_lea.vmem [#allocation5], %s131
        %v133 = vld [vmem:[%s114] sm:$0xff]
        %v134 = vld [vmem:[%s114 + $0x8] sm:$0xff]
        %v135 = vld [vmem:[%s114 + $0x10] sm:$0xff]
        %v136 = vld [vmem:[%s114 + $0x18] sm:$0xff]
        %v137 = vld [vmem:[%s114 + $0x20] sm:$0xff]
        %v138 = vld [vmem:[%s114 + $0x28] sm:$0xff]
        %v139 = vld [vmem:[%s114 + $0x30] sm:$0xff]
        %v140 = vld [vmem:[%s114 + $0x38] sm:$0xff]
        %v141 = vld [vmem:[%s114 + $0x40] sm:$0xff]
        %v142 = vld [vmem:[%s114 + $0x48] sm:$0xff]
        %v143 = vld [vmem:[%s114 + $0x50] sm:$0xff]
        %v144 = vld [vmem:[%s114 + $0x58] sm:$0xff]
        %v145 = vld [vmem:[%s114 + $0x60] sm:$0xff]
        %v146 = vld [vmem:[%s114 + $0x68] sm:$0xff]
        %v147 = vld [vmem:[%s114 + $0x70] sm:$0xff]
        %v148 = vld [vmem:[%s114 + $0x78] sm:$0xff]
        %v149 = vld [vmem:[%s114 + $0x80] sm:$0xff]
        %v150 = vld [vmem:[%s114 + $0x88] sm:$0xff]
        %v151 = vld [vmem:[%s114 + $0x90] sm:$0xff]
        %v152 = vld [vmem:[%s114 + $0x98] sm:$0xff]
        %v153 = vld [vmem:[%s114 + $0xa0] sm:$0xff]
        %v154 = vld [vmem:[%s114 + $0xa8] sm:$0xff]
        %v155 = vld [vmem:[%s114 + $0xb0] sm:$0xff]
        %v156 = vld [vmem:[%s114 + $0xb8] sm:$0xff]
        %v157 = vld [vmem:[%s114 + $0xc0] sm:$0xff]
        %v158 = vld [vmem:[%s114 + $0xc8] sm:$0xff]
        %v159 = vld [vmem:[%s114 + $0xd0] sm:$0xff]
        %v160 = vld [vmem:[%s114 + $0xd8] sm:$0xff]
        %v161 = vld [vmem:[%s114 + $0xe0] sm:$0xff]
        %v162 = vld [vmem:[%s114 + $0xe8] sm:$0xff]
        %v163 = vld [vmem:[%s114 + $0xf0] sm:$0xff]
        %v164 = vld [vmem:[%s114 + $0xf8] sm:$0xff]
        %v165 = vld [vmem:[%s114 + $0x100] sm:$0xff]
        %v166 = vld [vmem:[%s114 + $0x108] sm:$0xff]
        %v167 = vld [vmem:[%s114 + $0x110] sm:$0xff]
        %v168 = vld [vmem:[%s114 + $0x118] sm:$0xff]
        %v169 = vld [vmem:[%s114 + $0x120] sm:$0xff]
        %v170 = vld [vmem:[%s114 + $0x128] sm:$0xff]
        %v171 = vld [vmem:[%s114 + $0x130] sm:$0xff]
        %v172 = vld [vmem:[%s114 + $0x138] sm:$0xff]
        %v173 = vld [vmem:[%s114 + $0x140] sm:$0xff]
        %v174 = vld [vmem:[%s114 + $0x148] sm:$0xff]
        %v175 = vld [vmem:[%s114 + $0x150] sm:$0xff]
        %v176 = vld [vmem:[%s114 + $0x158] sm:$0xff]
        %v177 = vld [vmem:[%s114 + $0x160] sm:$0xff]
        %v178 = vld [vmem:[%s114 + $0x168] sm:$0xff]
        %v179 = vld [vmem:[%s114 + $0x170] sm:$0xff]
        %v180 = vld [vmem:[%s114 + $0x178] sm:$0xff]
        %v181 = vld [vmem:[%s114 + $0x180] sm:$0xff]
        %v182 = vld [vmem:[%s114 + $0x188] sm:$0xff]
        %v183 = vld [vmem:[%s114 + $0x190] sm:$0xff]
        %v184 = vld [vmem:[%s114 + $0x198] sm:$0xff]
        %v185 = vld [vmem:[%s114 + $0x1a0] sm:$0xff]
        %v186 = vld [vmem:[%s114 + $0x1a8] sm:$0xff]
        %v187 = vld [vmem:[%s114 + $0x1b0] sm:$0xff]
        %v188 = vld [vmem:[%s114 + $0x1b8] sm:$0xff]
        %v189 = vld [vmem:[%s114 + $0x1c0] sm:$0xff]
        %v190 = vld [vmem:[%s114 + $0x1c8] sm:$0xff]
        %v191 = vld [vmem:[%s114 + $0x1d0] sm:$0xff]
        %v192 = vld [vmem:[%s114 + $0x1d8] sm:$0xff]
        %v193 = vld [vmem:[%s114 + $0x1e0] sm:$0xff]
        %v194 = vld [vmem:[%s114 + $0x1e8] sm:$0xff]
        %v195 = vld [vmem:[%s114 + $0x1f0] sm:$0xff]
        %v196 = vld [vmem:[%s114 + $0x1f8] sm:$0xff]
        %v197 = vtanh.pop %v133
        %v198 = vtanh.pop %v134
        %v199 = vtanh.pop %v135
        %v200 = vtanh.pop %v136
        %v201 = vtanh.pop %v137
        %v202 = vtanh.pop %v138
        %v203 = vtanh.pop %v139
        %v204 = vtanh.pop %v140
        %v205 = vtanh.pop %v141
        %v206 = vtanh.pop %v142
        %v207 = vtanh.pop %v143
        %v208 = vtanh.pop %v144
        %v209 = vtanh.pop %v145
        %v210 = vtanh.pop %v146
        %v211 = vtanh.pop %v147
        %v212 = vtanh.pop %v148
        %v213 = vtanh.pop %v149
        %v214 = vtanh.pop %v150
        %v215 = vtanh.pop %v151
        %v216 = vtanh.pop %v152
        %v217 = vtanh.pop %v153
        %v218 = vtanh.pop %v154
        %v219 = vtanh.pop %v155
        %v220 = vtanh.pop %v156
        %v221 = vtanh.pop %v157
        %v222 = vtanh.pop %v158
        %v223 = vtanh.pop %v159
        %v224 = vtanh.pop %v160
        %v225 = vtanh.pop %v161
        %v226 = vtanh.pop %v162
        %v227 = vtanh.pop %v163
        %v228 = vtanh.pop %v164
        %v229 = vtanh.pop %v165
        %v230 = vtanh.pop %v166
        %v231 = vtanh.pop %v167
        %v232 = vtanh.pop %v168
        %v233 = vtanh.pop %v169
        %v234 = vtanh.pop %v170
        %v235 = vtanh.pop %v171
        %v236 = vtanh.pop %v172
        %v237 = vtanh.pop %v173
        %v238 = vtanh.pop %v174
        %v239 = vtanh.pop %v175
        %v240 = vtanh.pop %v176
        %v241 = vtanh.pop %v177
        %v242 = vtanh.pop %v178
        %v243 = vtanh.pop %v179
        %v244 = vtanh.pop %v180
        %v245 = vtanh.pop %v181
        %v246 = vtanh.pop %v182
        %v247 = vtanh.pop %v183
        %v248 = vtanh.pop %v184
        %v249 = vtanh.pop %v185
        %v250 = vtanh.pop %v186
        %v251 = vtanh.pop %v187
        %v252 = vtanh.pop %v188
        %v253 = vtanh.pop %v189
        %v254 = vtanh.pop %v190
        %v255 = vtanh.pop %v191
        %v256 = vtanh.pop %v192
        %v257 = vtanh.pop %v193
        %v258 = vtanh.pop %v194
        %v259 = vtanh.pop %v195
        %v260 = vtanh.pop %v196
        %261 = vst [vmem:[%s132] sm:$0xff] %v197
        %262 = vst [vmem:[%s132 + $0x8] sm:$0xff] %v198
        %263 = vst [vmem:[%s132 + $0x10] sm:$0xff] %v199
        %264 = vst [vmem:[%s132 + $0x18] sm:$0xff] %v200
        %265 = vst [vmem:[%s132 + $0x20] sm:$0xff] %v201
        %266 = vst [vmem:[%s132 + $0x28] sm:$0xff] %v202
        %267 = vst [vmem:[%s132 + $0x30] sm:$0xff] %v203
        %268 = vst [vmem:[%s132 + $0x38] sm:$0xff] %v204
        %269 = vst [vmem:[%s132 + $0x40] sm:$0xff] %v205
        %270 = vst [vmem:[%s132 + $0x48] sm:$0xff] %v206
        %271 = vst [vmem:[%s132 + $0x50] sm:$0xff] %v207
        %272 = vst [vmem:[%s132 + $0x58] sm:$0xff] %v208
        %273 = vst [vmem:[%s132 + $0x60] sm:$0xff] %v209
        %274 = vst [vmem:[%s132 + $0x68] sm:$0xff] %v210
        %275 = vst [vmem:[%s132 + $0x70] sm:$0xff] %v211
        %276 = vst [vmem:[%s132 + $0x78] sm:$0xff] %v212
        %277 = vst [vmem:[%s132 + $0x80] sm:$0xff] %v213
        %278 = vst [vmem:[%s132 + $0x88] sm:$0xff] %v214
        %279 = vst [vmem:[%s132 + $0x90] sm:$0xff] %v215
        %280 = vst [vmem:[%s132 + $0x98] sm:$0xff] %v216
        %281 = vst [vmem:[%s132 + $0xa0] sm:$0xff] %v217
        %282 = vst [vmem:[%s132 + $0xa8] sm:$0xff] %v218
        %283 = vst [vmem:[%s132 + $0xb0] sm:$0xff] %v219
        %284 = vst [vmem:[%s132 + $0xb8] sm:$0xff] %v220
        %285 = vst [vmem:[%s132 + $0xc0] sm:$0xff] %v221
        %286 = vst [vmem:[%s132 + $0xc8] sm:$0xff] %v222
        %287 = vst [vmem:[%s132 + $0xd0] sm:$0xff] %v223
        %288 = vst [vmem:[%s132 + $0xd8] sm:$0xff] %v224
        %289 = vst [vmem:[%s132 + $0xe0] sm:$0xff] %v225
        %290 = vst [vmem:[%s132 + $0xe8] sm:$0xff] %v226
        %291 = vst [vmem:[%s132 + $0xf0] sm:$0xff] %v227
        %292 = vst [vmem:[%s132 + $0xf8] sm:$0xff] %v228
        %293 = vst [vmem:[%s132 + $0x100] sm:$0xff] %v229
        %294 = vst [vmem:[%s132 + $0x108] sm:$0xff] %v230
        %295 = vst [vmem:[%s132 + $0x110] sm:$0xff] %v231
        %296 = vst [vmem:[%s132 + $0x118] sm:$0xff] %v232
        %297 = vst [vmem:[%s132 + $0x120] sm:$0xff] %v233
        %298 = vst [vmem:[%s132 + $0x128] sm:$0xff] %v234
        %299 = vst [vmem:[%s132 + $0x130] sm:$0xff] %v235
        %300 = vst [vmem:[%s132 + $0x138] sm:$0xff] %v236
        %301 = vst [vmem:[%s132 + $0x140] sm:$0xff] %v237
        %302 = vst [vmem:[%s132 + $0x148] sm:$0xff] %v238
        %303 = vst [vmem:[%s132 + $0x150] sm:$0xff] %v239
        %304 = vst [vmem:[%s132 + $0x158] sm:$0xff] %v240
        %305 = vst [vmem:[%s132 + $0x160] sm:$0xff] %v241
        %306 = vst [vmem:[%s132 + $0x168] sm:$0xff] %v242
        %307 = vst [vmem:[%s132 + $0x170] sm:$0xff] %v243
        %308 = vst [vmem:[%s132 + $0x178] sm:$0xff] %v244
        %309 = vst [vmem:[%s132 + $0x180] sm:$0xff] %v245
        %310 = vst [vmem:[%s132 + $0x188] sm:$0xff] %v246
        %311 = vst [vmem:[%s132 + $0x190] sm:$0xff] %v247
        %312 = vst [vmem:[%s132 + $0x198] sm:$0xff] %v248
        %313 = vst [vmem:[%s132 + $0x1a0] sm:$0xff] %v249
        %314 = vst [vmem:[%s132 + $0x1a8] sm:$0xff] %v250
        %315 = vst [vmem:[%s132 + $0x1b0] sm:$0xff] %v251
        %316 = vst [vmem:[%s132 + $0x1b8] sm:$0xff] %v252
        %317 = vst [vmem:[%s132 + $0x1c0] sm:$0xff] %v253
        %318 = vst [vmem:[%s132 + $0x1c8] sm:$0xff] %v254
        %319 = vst [vmem:[%s132 + $0x1d0] sm:$0xff] %v255
        %320 = vst [vmem:[%s132 + $0x1d8] sm:$0xff] %v256
        %321 = vst [vmem:[%s132 + $0x1e0] sm:$0xff] %v257
        %322 = vst [vmem:[%s132 + $0x1e8] sm:$0xff] %v258
        %323 = vst [vmem:[%s132 + $0x1f0] sm:$0xff] %v259
        %324 = vst [vmem:[%s132 + $0x1f8] sm:$0xff] %v260
        %s325 = sand.u32 %s52, 1
        %s326 = scalar_lea.sflag [#allocation4], %s325
        %s327 = sand.u32 %s52, 1
        %s328 = smul.addr %s327, 512
        %s329 = scalar_lea.vmem [#allocation5], %s328
        // Predicated region
        $region29: #{tpu_custom_call.1} parent=23 // pred_check
          %p330 = pneg %p62
        $region30: #{tpu_custom_call.1} parent=23 // pred_check_branch
          %332 = sbr.rel (%p330) target = $region32
        $region31: #{tpu_custom_call.1} parent=23 // pred_region
          %s334 = ssub.s32 8192, 8192
          %335 = vsyncadd %s326, %s334
          %s336 = smul.addr %s18, 64
          %s337 = smul.addr %s336, 128
          %s338 = scalar_lea.hbm %s1, %s337
          %s340 = sshll.u32 %s329, 4
          %s341 = int_to_ptr.vmem [resolvable:$true] %s340
          %343 = dma.vmem_to_hbm [thread:$0]  %s341, 8192, %s338, %s326
        $region32: #{tpu_custom_call.1} parent=23 // pred_fallthru
          _
      $region24: #{tpu_custom_call.1} parent=5 // pred_fallthru
        _
      %p344 = scmp.le.s32.totalorder 2, %s13
      // Predicated region
      $region33: #{tpu_custom_call.1} parent=5 // pred_check
        %p345 = pneg %p344
      $region34: #{tpu_custom_call.1} parent=5 // pred_check_branch
        %347 = sbr.rel (%p345) target = $region36
      $region35: #{tpu_custom_call.1} parent=5 // pred_region
        %s348 = ssub.s32 %s13, 2
        // Predicated region
        $region37: #{tpu_custom_call.1} parent=35 // pred_check
          %p349 = pneg %p68
        $region38: #{tpu_custom_call.1} parent=35 // pred_check_branch
          %351 = sbr.rel (%p349) target = $region40
        $region39: #{tpu_custom_call.1} parent=35 // pred_region
          %s352 = sand.u32 %s53, 1
          %s353 = scalar_lea.sflag [#allocation4], %s352
          %s354 = sand.u32 %s53, 1
          %s355 = smul.addr %s354, 512
          %s356 = scalar_lea.vmem [#allocation5], %s355
          %357 = dma.done %s353, 8192
        $region40: #{tpu_custom_call.1} parent=35 // pred_fallthru
          _
      $region36: #{tpu_custom_call.1} parent=5 // pred_fallthru
        _
    $region6: #{tpu_custom_call.1} parent=1 // loop_footer
      %s17 = sadd.s32 1, %s13
    $region7: #{tpu_custom_call.1} parent=1 // loop_footer_branch
      %12 = sbr.rel target = $region3
    $region8: #{tpu_custom_call.1} parent=1 // loop_exit
      _
    %358 = vsyncpa [#allocation3], 1
    %s359 = scalar_lea.sflag [#allocation3], 1
    %360 = vsyncpa %s359, 1
    %361 = vsyncpa [#allocation4], 1
    %s362 = scalar_lea.sflag [#allocation4], 1
    %363 = vsyncpa %s362, 1

</llo_original>
